<compile_context>
chip_gen: v7x
topology: tpu7x:2x2x1
jax: 0.10.0
libtpu: 0.0.40
codegen_flags: <defaults>
</compile_context>

<pallas_src>
import jax
import jax.numpy as jnp
from jax.experimental import pallas as pl
from jax.experimental.pallas import tpu as pltpu


def _round_up(x, m):
    return ((x + m - 1) // m) * m


def qatten_kernel(q_ref, s_ref, f_ref,
                  w1_ref, b1_ref,        # packed first layers: (H1q+H1c, S), (H1q+H1c, 1)
                  wq2_ref, bq2_ref,      # (D, H1q), (D, 1)
                  wc2_ref, bc2_ref,      # (1, H1c), (1, 1)
                  wk_ref, bk_ref,        # head-summed keys: (D, OBS), (1, D)
                  out_ref):
    s = s_ref[...]                       # (S,      TB)
    q = q_ref[...]                       # (A,      TB)
    f = f_ref[...]                       # (A*OBS,  TB)

    n_agents = q.shape[0]
    obs = f.shape[0] // n_agents
    h1q = wq2_ref.shape[1]

    # Shared first layer of the query / c_value MLPs: one 128-wide MXU matmul.
    h = jnp.dot(w1_ref[...], s, preferred_element_type=jnp.float32) + b1_ref[...]
    h = jnp.maximum(h, 0.0)              # (H1q+H1c, TB)
    hq = h[:h1q, :]
    hc = h[h1q:, :]

    emb = jnp.dot(wq2_ref[...], hq, preferred_element_type=jnp.float32) + bq2_ref[...]  # (D, TB)
    c = jnp.dot(wc2_ref[...], hc, preferred_element_type=jnp.float32) + bc2_ref[...]    # (1, TB)

    # g = sum_a q_a * f_a : weighted feature sum over agents (tiny unrolled VPU loop).
    g = q[0:1, :] * f[0:obs, :]
    for a in range(1, n_agents):
        g = g + q[a:a + 1, :] * f[a * obs:(a + 1) * obs, :]                             # (OBS, TB)

    k = jnp.dot(wk_ref[...], g, preferred_element_type=jnp.float32)                     # (D, TB)
    term = jnp.sum(emb * k, axis=0, keepdims=True)                                      # (1, TB)
    bterm = jnp.dot(bk_ref[...], emb, preferred_element_type=jnp.float32)               # (1, TB)
    qsum = jnp.sum(q, axis=0, keepdims=True)                                            # (1, TB)

    out_ref[...] = term + qsum * bterm + c                                              # (1, TB)


def qatten_forward(q_values, states, individual_fs, params, *, tb=1024):
    episode_num, episode_len, n_agents = q_values.shape
    state_shape = states.shape[-1]
    obs_shape = individual_fs.shape[-1]
    B = episode_num * episode_len

    (wq1, bq1, wq2, bq2, wk, bk, wc1, bc1, wc2, bc2) = params

    # Tile / padding: lane dim stays a multiple of 128; pad B instead of asserting.
    tb_eff = tb if B >= tb else _round_up(B, 128)
    b_pad = _round_up(B, tb_eff)
    pad = b_pad - B

    q2 = q_values.reshape(B, n_agents).astype(jnp.float32)
    s2 = states.reshape(B, state_shape).astype(jnp.float32)
    f2 = individual_fs.reshape(B, n_agents * obs_shape).astype(jnp.float32)
    if pad:
        q2 = jnp.pad(q2, ((0, pad), (0, 0)))
        s2 = jnp.pad(s2, ((0, pad), (0, 0)))
        f2 = jnp.pad(f2, ((0, pad), (0, 0)))
    qT, sT, fT = q2.T, s2.T, f2.T        # batch on lanes

    # Parameter packing (layout plumbing, once per call).
    w1 = jnp.concatenate([wq1, wc1], axis=1).T       # (H1q+H1c, S)
    b1 = jnp.concatenate([bq1, bc1], axis=1).T       # (H1q+H1c, 1)
    wq2T, bq2T = wq2.T, bq2.T                        # (D, H1q), (D, 1)
    wc2T, bc2T = wc2.T, bc2.T                        # (1, H1c), (1, 1)
    wkT = jnp.sum(wk, axis=0).T                      # (D, OBS)  heads pre-summed
    bkR = jnp.sum(bk, axis=0)                        # (1, D)

    def full_spec(arr):
        ndim = arr.ndim
        return pl.BlockSpec(arr.shape, lambda i, _n=ndim: (0,) * _n)

    out = pl.pallas_call(
        qatten_kernel,
        out_shape=jax.ShapeDtypeStruct((1, b_pad), jnp.float32),
        grid_spec=pltpu.PrefetchScalarGridSpec(
            num_scalar_prefetch=0,
            grid=(b_pad // tb_eff,),
            in_specs=[
                pl.BlockSpec((n_agents, tb_eff), lambda i: (0, i)),
                pl.BlockSpec((state_shape, tb_eff), lambda i: (0, i)),
                pl.BlockSpec((n_agents * obs_shape, tb_eff), lambda i: (0, i)),
                full_spec(w1), full_spec(b1),
                full_spec(wq2T), full_spec(bq2T),
                full_spec(wc2T), full_spec(bc2T),
                full_spec(wkT), full_spec(bkR),
            ],
            out_specs=pl.BlockSpec((1, tb_eff), lambda i: (0, i)),
        ),
        compiler_params=pltpu.CompilerParams(
            dimension_semantics=("parallel",)),
    )(qT, sT, fT, w1, b1, wq2T, bq2T, wc2T, bc2T, wkT, bkR)

    return out.reshape(b_pad)[:B].reshape(episode_num, episode_len, 1)


def qatten_reference(q_values, states, individual_fs, params):
    """Pure-JAX reference mirroring the PyTorch forward."""
    (wq1, bq1, wq2, bq2, wk, bk, wc1, bc1, wc2, bc2) = params
    episode_num, episode_len, n_agents = q_values.shape
    B = episode_num * episode_len
    s2 = states.reshape(B, -1).astype(jnp.float32)
    q2 = q_values.reshape(B, n_agents).astype(jnp.float32)
    f2 = individual_fs.reshape(B, n_agents, -1).astype(jnp.float32)

    emb_s = jnp.maximum(s2 @ wq1 + bq1, 0.0) @ wq2 + bq2        # (B, D)
    lam = jnp.zeros((B, n_agents), jnp.float32)
    for h in range(wk.shape[0]):
        key_h = jnp.einsum('bao,od->bad', f2, wk[h]) + bk[h]    # (B, A, D)
        lam = lam + jnp.einsum('bd,bad->ba', emb_s, key_h)
    c = jnp.maximum(s2 @ wc1 + bc1, 0.0) @ wc2 + bc2            # (B, 1)
    q_tot = jnp.sum(lam * q2, axis=-1, keepdims=True) + c
    return q_tot.reshape(episode_num, episode_len, 1)


def _linear_init(key, fan_in, fan_out):
    bound = 1.0 / jnp.sqrt(jnp.float32(fan_in))
    kw, kb = jax.random.split(key)
    w = jax.random.uniform(kw, (fan_in, fan_out), jnp.float32, -bound, bound)
    b = jax.random.uniform(kb, (1, fan_out), jnp.float32, -bound, bound)
    return w, b


if __name__ == "__main__":
    # args (small, consistent with the module)
    episode_num, episode_len = 2, 8
    n_agents, obs_shape, state_shape = 3, 16, 32
    query_hidden_dim1, query_hidden_dim2 = 64, 32     # key_hidden_dim == query_hidden_dim2
    key_hidden_dim = query_hidden_dim2
    c_hidden_dim1, c_hidden_dim2 = 64, 1
    num_head = 4
    # TODO(synk): is_head_weight branch is unused by forward (and buggy upstream); not implemented.

    root = jax.random.PRNGKey(0)
    keys = jax.random.split(root, 8 + num_head)

    wq1, bq1 = _linear_init(keys[0], state_shape, query_hidden_dim1)
    wq2, bq2 = _linear_init(keys[1], query_hidden_dim1, query_hidden_dim2)
    wc1, bc1 = _linear_init(keys[2], state_shape, c_hidden_dim1)
    wc2, bc2 = _linear_init(keys[3], c_hidden_dim1, c_hidden_dim2)
    wk_list, bk_list = [], []
    for h in range(num_head):
        w, b = _linear_init(keys[4 + h], obs_shape, key_hidden_dim)
        wk_list.append(w)
        bk_list.append(b)
    wk = jnp.stack(wk_list, axis=0)                     # (H, obs, D)
    bk = jnp.stack(bk_list, axis=0)                     # (H, 1, D)
    params = (wq1, bq1, wq2, bq2, wk, bk, wc1, bc1, wc2, bc2)

    kq, ks, kf = jax.random.split(keys[-1], 3)
    q_values = jax.random.normal(kq, (episode_num, episode_len, n_agents), jnp.float32)
    states = jax.random.normal(ks, (episode_num, episode_len, state_shape), jnp.float32)
    individual_fs = jax.random.normal(
        kf, (episode_num, episode_len, n_agents, obs_shape), jnp.float32)

    out = qatten_forward(q_values, states, individual_fs, params)
    out = jax.block_until_ready(out)

    ref = qatten_reference(q_values, states, individual_fs, params)
    assert out.shape == (episode_num, episode_len, 1)
    assert jnp.allclose(out, ref, rtol=1e-4, atol=1e-4), (out, ref)
    print("KERNEL_OK")
</pallas_src>

<mosaic_0001>
module attributes {stable_mosaic.version = 11 : i64} {
  func.func @qatten_kernel(%arg0: i32, %arg1: memref<3x128xf32, #tpu.memory_space<vmem>>, %arg2: memref<32x128xf32, #tpu.memory_space<vmem>>, %arg3: memref<48x128xf32, #tpu.memory_space<vmem>>, %arg4: memref<128x32xf32, #tpu.memory_space<vmem>>, %arg5: memref<128x1xf32, #tpu.memory_space<vmem>>, %arg6: memref<32x64xf32, #tpu.memory_space<vmem>>, %arg7: memref<32x1xf32, #tpu.memory_space<vmem>>, %arg8: memref<1x64xf32, #tpu.memory_space<vmem>>, %arg9: memref<1x1xf32, #tpu.memory_space<vmem>>, %arg10: memref<32x16xf32, #tpu.memory_space<vmem>>, %arg11: memref<1x32xf32, #tpu.memory_space<vmem>>, %arg12: memref<1x128xf32, #tpu.memory_space<vmem>>) attributes {dimension_semantics = [#tpu.dimension_semantics<parallel>], iteration_bounds = array<i64: 1>, scalar_prefetch = 0 : i64, scratch_operands = 0 : i64, tpu.core_type = #tpu.core_type<tc>, window_params = [{transform_indices = @transform_0, window_bounds = array<i64: 3, 128>}, {transform_indices = @transform_1, window_bounds = array<i64: 32, 128>}, {transform_indices = @transform_2, window_bounds = array<i64: 48, 128>}, {pipeline_mode = #tpu.pipeline_mode<synchronous>, transform_indices = @transform_3, window_bounds = array<i64: 128, 32>}, {pipeline_mode = #tpu.pipeline_mode<synchronous>, transform_indices = @transform_4, window_bounds = array<i64: 128, 1>}, {pipeline_mode = #tpu.pipeline_mode<synchronous>, transform_indices = @transform_5, window_bounds = array<i64: 32, 64>}, {pipeline_mode = #tpu.pipeline_mode<synchronous>, transform_indices = @transform_6, window_bounds = array<i64: 32, 1>}, {pipeline_mode = #tpu.pipeline_mode<synchronous>, transform_indices = @transform_7, window_bounds = array<i64: 1, 64>}, {pipeline_mode = #tpu.pipeline_mode<synchronous>, transform_indices = @transform_8, window_bounds = array<i64: 1, 1>}, {pipeline_mode = #tpu.pipeline_mode<synchronous>, transform_indices = @transform_9, window_bounds = array<i64: 32, 16>}, {pipeline_mode = #tpu.pipeline_mode<synchronous>, transform_indices = @transform_10, window_bounds = array<i64: 1, 32>}, {transform_indices = @transform_11, window_bounds = array<i64: 1, 128>}]} {
    %c0 = arith.constant 0 : index
    %c0_0 = arith.constant 0 : index
    %0 = vector.load %arg2[%c0, %c0_0] : memref<32x128xf32, #tpu.memory_space<vmem>>, vector<32x128xf32>
    %c0_1 = arith.constant 0 : index
    %c0_2 = arith.constant 0 : index
    %1 = vector.load %arg1[%c0_1, %c0_2] : memref<3x128xf32, #tpu.memory_space<vmem>>, vector<3x128xf32>
    %c0_3 = arith.constant 0 : index
    %c0_4 = arith.constant 0 : index
    %2 = vector.load %arg3[%c0_3, %c0_4] : memref<48x128xf32, #tpu.memory_space<vmem>>, vector<48x128xf32>
    %c0_5 = arith.constant 0 : index
    %c0_6 = arith.constant 0 : index
    %3 = vector.load %arg4[%c0_5, %c0_6] : memref<128x32xf32, #tpu.memory_space<vmem>>, vector<128x32xf32>
    %cst = arith.constant dense<0.000000e+00> : vector<128x128xf32>
    %4 = tpu.matmul %3, %0, %cst {dimension_numbers = #tpu.dot_dimension_numbers<[1], [0], [0], [1], [0, 0, 1, 1], [], []>} : vector<128x32xf32>, vector<32x128xf32>, vector<128x128xf32> -> vector<128x128xf32>
    %c0_7 = arith.constant 0 : index
    %c0_8 = arith.constant 0 : index
    %5 = vector.load %arg5[%c0_7, %c0_8] : memref<128x1xf32, #tpu.memory_space<vmem>>, vector<128x1xf32>
    %6 = vector.broadcast %5 : vector<128x1xf32> to vector<128x128xf32>
    %7 = arith.addf %4, %6 : vector<128x128xf32>
    %cst_9 = arith.constant 0.000000e+00 : f32
    %8 = vector.broadcast %cst_9 : f32 to vector<128x128xf32>
    %9 = arith.maximumf %7, %8 : vector<128x128xf32>
    %10 = vector.extract_strided_slice %9 {offsets = [0, 0], sizes = [64, 128], strides = [1, 1]} : vector<128x128xf32> to vector<64x128xf32>
    %11 = vector.extract_strided_slice %9 {offsets = [64, 0], sizes = [64, 128], strides = [1, 1]} : vector<128x128xf32> to vector<64x128xf32>
    %c0_10 = arith.constant 0 : index
    %c0_11 = arith.constant 0 : index
    %12 = vector.load %arg6[%c0_10, %c0_11] : memref<32x64xf32, #tpu.memory_space<vmem>>, vector<32x64xf32>
    %cst_12 = arith.constant dense<0.000000e+00> : vector<32x128xf32>
    %13 = tpu.matmul %12, %10, %cst_12 {dimension_numbers = #tpu.dot_dimension_numbers<[1], [0], [0], [1], [0, 0, 1, 1], [], []>} : vector<32x64xf32>, vector<64x128xf32>, vector<32x128xf32> -> vector<32x128xf32>
    %c0_13 = arith.constant 0 : index
    %c0_14 = arith.constant 0 : index
    %14 = vector.load %arg7[%c0_13, %c0_14] : memref<32x1xf32, #tpu.memory_space<vmem>>, vector<32x1xf32>
    %15 = vector.broadcast %14 : vector<32x1xf32> to vector<32x128xf32>
    %16 = arith.addf %13, %15 : vector<32x128xf32>
    %c0_15 = arith.constant 0 : index
    %c0_16 = arith.constant 0 : index
    %17 = vector.load %arg8[%c0_15, %c0_16] : memref<1x64xf32, #tpu.memory_space<vmem>>, vector<1x64xf32>
    %cst_17 = arith.constant dense<0.000000e+00> : vector<1x128xf32>
    %18 = tpu.matmul %17, %11, %cst_17 {dimension_numbers = #tpu.dot_dimension_numbers<[1], [0], [0], [1], [0, 0, 1, 1], [], []>} : vector<1x64xf32>, vector<64x128xf32>, vector<1x128xf32> -> vector<1x128xf32>
    %c0_18 = arith.constant 0 : index
    %c0_19 = arith.constant 0 : index
    %19 = vector.load %arg9[%c0_18, %c0_19] : memref<1x1xf32, #tpu.memory_space<vmem>>, vector<1x1xf32>
    %20 = vector.broadcast %19 : vector<1x1xf32> to vector<1x128xf32>
    %21 = arith.addf %18, %20 : vector<1x128xf32>
    %22 = vector.extract_strided_slice %1 {offsets = [0, 0], sizes = [1, 128], strides = [1, 1]} : vector<3x128xf32> to vector<1x128xf32>
    %23 = vector.extract_strided_slice %2 {offsets = [0, 0], sizes = [16, 128], strides = [1, 1]} : vector<48x128xf32> to vector<16x128xf32>
    %24 = vector.broadcast %22 : vector<1x128xf32> to vector<16x128xf32>
    %25 = arith.mulf %24, %23 : vector<16x128xf32>
    %26 = vector.extract_strided_slice %1 {offsets = [1, 0], sizes = [1, 128], strides = [1, 1]} : vector<3x128xf32> to vector<1x128xf32>
    %27 = vector.extract_strided_slice %2 {offsets = [16, 0], sizes = [16, 128], strides = [1, 1]} : vector<48x128xf32> to vector<16x128xf32>
    %28 = vector.broadcast %26 : vector<1x128xf32> to vector<16x128xf32>
    %29 = arith.mulf %28, %27 : vector<16x128xf32>
    %30 = arith.addf %25, %29 : vector<16x128xf32>
    %31 = vector.extract_strided_slice %1 {offsets = [2, 0], sizes = [1, 128], strides = [1, 1]} : vector<3x128xf32> to vector<1x128xf32>
    %32 = vector.extract_strided_slice %2 {offsets = [32, 0], sizes = [16, 128], strides = [1, 1]} : vector<48x128xf32> to vector<16x128xf32>
    %33 = vector.broadcast %31 : vector<1x128xf32> to vector<16x128xf32>
    %34 = arith.mulf %33, %32 : vector<16x128xf32>
    %35 = arith.addf %30, %34 : vector<16x128xf32>
    %c0_20 = arith.constant 0 : index
    %c0_21 = arith.constant 0 : index
    %36 = vector.load %arg10[%c0_20, %c0_21] : memref<32x16xf32, #tpu.memory_space<vmem>>, vector<32x16xf32>
    %cst_22 = arith.constant dense<0.000000e+00> : vector<32x128xf32>
    %37 = tpu.matmul %36, %35, %cst_22 {dimension_numbers = #tpu.dot_dimension_numbers<[1], [0], [0], [1], [0, 0, 1, 1], [], []>} : vector<32x16xf32>, vector<16x128xf32>, vector<32x128xf32> -> vector<32x128xf32>
    %38 = arith.mulf %16, %37 : vector<32x128xf32>
    %cst_23 = arith.constant dense<0.000000e+00> : vector<128xf32>
    %39 = vector.multi_reduction <add>, %38, %cst_23 [0] : vector<32x128xf32> to vector<128xf32>
    %40 = vector.shape_cast %39 : vector<128xf32> to vector<1x128xf32>
    %c0_24 = arith.constant 0 : index
    %c0_25 = arith.constant 0 : index
    %41 = vector.load %arg11[%c0_24, %c0_25] : memref<1x32xf32, #tpu.memory_space<vmem>>, vector<1x32xf32>
    %cst_26 = arith.constant dense<0.000000e+00> : vector<1x128xf32>
    %42 = tpu.matmul %41, %16, %cst_26 {dimension_numbers = #tpu.dot_dimension_numbers<[1], [0], [0], [1], [0, 0, 1, 1], [], []>} : vector<1x32xf32>, vector<32x128xf32>, vector<1x128xf32> -> vector<1x128xf32>
    %cst_27 = arith.constant dense<0.000000e+00> : vector<128xf32>
    %43 = vector.multi_reduction <add>, %1, %cst_27 [0] : vector<3x128xf32> to vector<128xf32>
    %44 = vector.shape_cast %43 : vector<128xf32> to vector<1x128xf32>
    %45 = arith.mulf %44, %42 : vector<1x128xf32>
    %46 = arith.addf %40, %45 : vector<1x128xf32>
    %47 = arith.addf %46, %21 : vector<1x128xf32>
    %c0_28 = arith.constant 0 : index
    %c0_29 = arith.constant 0 : index
    %48 = vector.load %arg12[%c0_28, %c0_29] : memref<1x128xf32, #tpu.memory_space<vmem>>, vector<1x128xf32>
    tpu.vector_store %arg12[%c0_28, %c0_29], %47 {strides = array<i32>} : memref<1x128xf32, #tpu.memory_space<vmem>>, vector<1x128xf32>,
    return
  }
  func.func @transform_0(%arg0: i32) -> (i32, i32) {
    %c0_i32 = arith.constant 0 : i32
    %c0_i32_0 = arith.constant 0 : i32
    return %c0_i32, %arg0 : i32, i32
  }
  func.func @transform_1(%arg0: i32) -> (i32, i32) {
    %c0_i32 = arith.constant 0 : i32
    %c0_i32_0 = arith.constant 0 : i32
    return %c0_i32, %arg0 : i32, i32
  }
  func.func @transform_2(%arg0: i32) -> (i32, i32) {
    %c0_i32 = arith.constant 0 : i32
    %c0_i32_0 = arith.constant 0 : i32
    return %c0_i32, %arg0 : i32, i32
  }
  func.func @transform_3(%arg0: i32) -> (i32, i32) {
    %c0_i32 = arith.constant 0 : i32
    %c0_i32_0 = arith.constant 0 : i32
    %c0_i32_1 = arith.constant 0 : i32
    return %c0_i32, %c0_i32_0 : i32, i32
  }
  func.func @transform_4(%arg0: i32) -> (i32, i32) {
    %c0_i32 = arith.constant 0 : i32
    %c0_i32_0 = arith.constant 0 : i32
    %c0_i32_1 = arith.constant 0 : i32
    return %c0_i32, %c0_i32_0 : i32, i32
  }
  func.func @transform_5(%arg0: i32) -> (i32, i32) {
    %c0_i32 = arith.constant 0 : i32
    %c0_i32_0 = arith.constant 0 : i32
    %c0_i32_1 = arith.constant 0 : i32
    return %c0_i32, %c0_i32_0 : i32, i32
  }
  func.func @transform_6(%arg0: i32) -> (i32, i32) {
    %c0_i32 = arith.constant 0 : i32
    %c0_i32_0 = arith.constant 0 : i32
    %c0_i32_1 = arith.constant 0 : i32
    return %c0_i32, %c0_i32_0 : i32, i32
  }
  func.func @transform_7(%arg0: i32) -> (i32, i32) {
    %c0_i32 = arith.constant 0 : i32
    %c0_i32_0 = arith.constant 0 : i32
    %c0_i32_1 = arith.constant 0 : i32
    return %c0_i32, %c0_i32_0 : i32, i32
  }
  func.func @transform_8(%arg0: i32) -> (i32, i32) {
    %c0_i32 = arith.constant 0 : i32
    %c0_i32_0 = arith.constant 0 : i32
    %c0_i32_1 = arith.constant 0 : i32
    return %c0_i32, %c0_i32_0 : i32, i32
  }
  func.func @transform_9(%arg0: i32) -> (i32, i32) {
    %c0_i32 = arith.constant 0 : i32
    %c0_i32_0 = arith.constant 0 : i32
    %c0_i32_1 = arith.constant 0 : i32
    return %c0_i32, %c0_i32_0 : i32, i32
  }
  func.func @transform_10(%arg0: i32) -> (i32, i32) {
    %c0_i32 = arith.constant 0 : i32
    %c0_i32_0 = arith.constant 0 : i32
    %c0_i32_1 = arith.constant 0 : i32
    return %c0_i32, %c0_i32_0 : i32, i32
  }
  func.func @transform_11(%arg0: i32) -> (i32, i32) {
    %c0_i32 = arith.constant 0 : i32
    %c0_i32_0 = arith.constant 0 : i32
    return %c0_i32, %arg0 : i32, i32
  }
}

</mosaic_0001>

<llo_original>
// kernel: tpu_custom_call.1
$region0: #{tpu_custom_call.1}
  #allocation0 [shape = 'u32[]', space=smem, size = 0x4, offset = 0x4, fixed_abs, tag = 'smem constant byte address 0x4 - core index']
  #allocation1 [shape = 'u32[144,128]{1,0:T(1,128)}', space=vmem, size = 0x12000, scoped, tag = 'internal scratch']
  #allocation2 [shape = 'f32[1,1]{1,0:T(1,128)S(1)}', space=vmem, size = 0x200, scoped, tag = 'scoped memory for tpu_custom_call.1']
  %s0 = inlined_call_operand.vmem [shape: f32[3,128], index: 0, kind: input, shape index: {}]
  %s1 = inlined_call_operand.vmem [shape: f32[32,128], index: 1, kind: input, shape index: {}]
  %s2 = inlined_call_operand.vmem [shape: f32[48,128], index: 2, kind: input, shape index: {}]
  %s3 = inlined_call_operand.vmem [shape: f32[128,32], index: 3, kind: input, shape index: {}]
  %s4 = inlined_call_operand.vmem [shape: f32[128,1], index: 4, kind: input, shape index: {}]
  %s5 = inlined_call_operand.vmem [shape: f32[32,64], index: 5, kind: input, shape index: {}]
  %s6 = inlined_call_operand.vmem [shape: f32[32,1], index: 6, kind: input, shape index: {}]
  %s7 = inlined_call_operand.vmem [shape: f32[1,64], index: 7, kind: input, shape index: {}]
  %s8 = inlined_call_operand.<no memory space> [shape: f32[1,1], index: 8, kind: input, shape index: {}]
  %s9 = inlined_call_operand.vmem [shape: f32[32,16], index: 9, kind: input, shape index: {}]
  %s10 = inlined_call_operand.vmem [shape: f32[1,32], index: 10, kind: input, shape index: {}]
  %s11 = inlined_call_operand.hbm [shape: f32[1,128], index: 11, kind: output, shape index: {}]
  %s12 = sld [smem:[#allocation0]]
  $region54: #{tpu_custom_call.1} parent=0
    _
  %s14 = ssub.s32 1, %s12
  %s15 = scalar_select 0, %s14, %s12
  %v16 = vstv %s8
  %17 = vst [vmem:[#allocation2] sm:$0x1] %v16
  $region1: #{tpu_custom_call.1} parent=0
    #allocation3 [shape = 'u8[512]{0}', space=vmem, size = 0x400, scoped, tag = 'output window, operand 0, single buffered']
    #allocation4 [shape = 's32[1]{0}', space=sflag, size = 0x4, scoped, tag = 'scoped memory for tpu_custom_call.1']
    %18 = vsyncpa [#allocation4], 0
    // Predicated region
    $region2: #{tpu_custom_call.1} parent=1 // pred_check
      _
    $region3: #{tpu_custom_call.1} parent=1 // pred_check_branch
      %20 = sbr.rel (0) target = $region5
    $region4: #{tpu_custom_call.1} parent=1 // pred_region
      _
    $region5: #{tpu_custom_call.1} parent=1 // pred_fallthru
      _
    // Predicated region
    $region6: #{tpu_custom_call.1} parent=1 // pred_check
      _
    $region7: #{tpu_custom_call.1} parent=1 // pred_check_branch
      %22 = sbr.rel (0) target = $region9
    $region8: #{tpu_custom_call.1} parent=1 // pred_region
      _
    $region9: #{tpu_custom_call.1} parent=1 // pred_fallthru
      _
    // Predicated region
    $region10: #{tpu_custom_call.1} parent=1 // pred_check
      _
    $region11: #{tpu_custom_call.1} parent=1 // pred_check_branch
      %24 = sbr.rel (0) target = $region13
    $region12: #{tpu_custom_call.1} parent=1 // pred_region
      _
    $region13: #{tpu_custom_call.1} parent=1 // pred_fallthru
      _
    // Predicated region
    $region14: #{tpu_custom_call.1} parent=1 // pred_check
      _
    $region15: #{tpu_custom_call.1} parent=1 // pred_check_branch
      %26 = sbr.rel (0) target = $region17
    $region16: #{tpu_custom_call.1} parent=1 // pred_region
      _
    $region17: #{tpu_custom_call.1} parent=1 // pred_fallthru
      _
    // Predicated region
    $region18: #{tpu_custom_call.1} parent=1 // pred_check
      _
    $region19: #{tpu_custom_call.1} parent=1 // pred_check_branch
      %28 = sbr.rel (0) target = $region21
    $region20: #{tpu_custom_call.1} parent=1 // pred_region
      _
    $region21: #{tpu_custom_call.1} parent=1 // pred_fallthru
      _
    // Predicated region
    $region22: #{tpu_custom_call.1} parent=1 // pred_check
      _
    $region23: #{tpu_custom_call.1} parent=1 // pred_check_branch
      %30 = sbr.rel (0) target = $region25
    $region24: #{tpu_custom_call.1} parent=1 // pred_region
      _
    $region25: #{tpu_custom_call.1} parent=1 // pred_fallthru
      _
    // Predicated region
    $region26: #{tpu_custom_call.1} parent=1 // pred_check
      _
    $region27: #{tpu_custom_call.1} parent=1 // pred_check_branch
      %32 = sbr.rel (0) target = $region29
    $region28: #{tpu_custom_call.1} parent=1 // pred_region
      _
    $region29: #{tpu_custom_call.1} parent=1 // pred_fallthru
      _
    // Predicated region
    $region30: #{tpu_custom_call.1} parent=1 // pred_check
      _
    $region31: #{tpu_custom_call.1} parent=1 // pred_check_branch
      %34 = sbr.rel (0) target = $region33
    $region32: #{tpu_custom_call.1} parent=1 // pred_region
      _
    $region33: #{tpu_custom_call.1} parent=1 // pred_fallthru
      _
    // Predicated region
    $region34: #{tpu_custom_call.1} parent=1 // pred_check
      _
    $region35: #{tpu_custom_call.1} parent=1 // pred_check_branch
      %36 = sbr.rel (0) target = $region37
    $region36: #{tpu_custom_call.1} parent=1 // pred_region
      _
    $region37: #{tpu_custom_call.1} parent=1 // pred_fallthru
      _
    // Predicated region
    $region38: #{tpu_custom_call.1} parent=1 // pred_check
      _
    $region39: #{tpu_custom_call.1} parent=1 // pred_check_branch
      %38 = sbr.rel (0) target = $region41
    $region40: #{tpu_custom_call.1} parent=1 // pred_region
      _
    $region41: #{tpu_custom_call.1} parent=1 // pred_fallthru
      _
    // Predicated region
    $region42: #{tpu_custom_call.1} parent=1 // pred_check
      _
    $region43: #{tpu_custom_call.1} parent=1 // pred_check_branch
      %40 = sbr.rel (0) target = $region45
    $region44: #{tpu_custom_call.1} parent=1 // pred_region
      _
    $region45: #{tpu_custom_call.1} parent=1 // pred_fallthru
      _
    %v41 = vld [vmem:[%s1] sm:$0xff]
    %v42 = vld [vmem:[%s1 + $0x8] sm:$0xff]
    %v43 = vld [vmem:[%s1 + $0x10] sm:$0xff]
    %v44 = vld [vmem:[%s1 + $0x18] sm:$0xff]
    %v45 = vld [vmem:[%s0] sm:$0x7]
    %v46 = vld [vmem:[%s2] sm:$0xff]
    %v47 = vld [vmem:[%s2 + $0x8] sm:$0xff]
    %v48 = vld [vmem:[%s2 + $0x10] sm:$0xff]
    %v49 = vld [vmem:[%s2 + $0x18] sm:$0xff]
    %v50 = vld [vmem:[%s2 + $0x20] sm:$0xff]
    %v51 = vld [vmem:[%s2 + $0x28] sm:$0xff]
    %v52 = vld [vmem:[%s3] sm:$0xff]
    %v53 = vld [vmem:[%s3 + $0x8] sm:$0xff]
    %v54 = vld [vmem:[%s3 + $0x10] sm:$0xff]
    %v55 = vld [vmem:[%s3 + $0x18] sm:$0xff]
    %v56 = vld [vmem:[%s3 + $0x20] sm:$0xff]
    %v57 = vld [vmem:[%s3 + $0x28] sm:$0xff]
    %v58 = vld [vmem:[%s3 + $0x30] sm:$0xff]
    %v59 = vld [vmem:[%s3 + $0x38] sm:$0xff]
    %v60 = vld [vmem:[%s3 + $0x40] sm:$0xff]
    %v61 = vld [vmem:[%s3 + $0x48] sm:$0xff]
    %v62 = vld [vmem:[%s3 + $0x50] sm:$0xff]
    %v63 = vld [vmem:[%s3 + $0x58] sm:$0xff]
    %v64 = vld [vmem:[%s3 + $0x60] sm:$0xff]
    %v65 = vld [vmem:[%s3 + $0x68] sm:$0xff]
    %v66 = vld [vmem:[%s3 + $0x70] sm:$0xff]
    %v67 = vld [vmem:[%s3 + $0x78] sm:$0xff]
    %v68 = vld [vmem:[%s4] sm:$0xff]
    %v69 = vld [vmem:[%s4 + $0x8] sm:$0xff]
    %v70 = vld [vmem:[%s4 + $0x10] sm:$0xff]
    %v71 = vld [vmem:[%s4 + $0x18] sm:$0xff]
    %v72 = vld [vmem:[%s4 + $0x20] sm:$0xff]
    %v73 = vld [vmem:[%s4 + $0x28] sm:$0xff]
    %v74 = vld [vmem:[%s4 + $0x30] sm:$0xff]
    %v75 = vld [vmem:[%s4 + $0x38] sm:$0xff]
    %v76 = vld [vmem:[%s4 + $0x40] sm:$0xff]
    %v77 = vld [vmem:[%s4 + $0x48] sm:$0xff]
    %v78 = vld [vmem:[%s4 + $0x50] sm:$0xff]
    %v79 = vld [vmem:[%s4 + $0x58] sm:$0xff]
    %v80 = vld [vmem:[%s4 + $0x60] sm:$0xff]
    %v81 = vld [vmem:[%s4 + $0x68] sm:$0xff]
    %v82 = vld [vmem:[%s4 + $0x70] sm:$0xff]
    %v83 = vld [vmem:[%s4 + $0x78] sm:$0xff]
    %85 = vset.pattern.permute.xlu0 0
    %86 = vperm.xlu0 %85, %v68
    %v87 = vpop.permute.xlu0 %86
    %90 = vset.pattern.permute.xlu0 0
    %91 = vperm.xlu0 %90, %v69
    %v92 = vpop.permute.xlu0 %91
    %95 = vset.pattern.permute.xlu0 0
    %96 = vperm.xlu0 %95, %v70
    %v97 = vpop.permute.xlu0 %96
    %100 = vset.pattern.permute.xlu0 0
    %101 = vperm.xlu0 %100, %v71
    %v102 = vpop.permute.xlu0 %101
    %105 = vset.pattern.permute.xlu0 0
    %106 = vperm.xlu0 %105, %v72
    %v107 = vpop.permute.xlu0 %106
    %110 = vset.pattern.permute.xlu0 0
    %111 = vperm.xlu0 %110, %v73
    %v112 = vpop.permute.xlu0 %111
    %115 = vset.pattern.permute.xlu0 0
    %116 = vperm.xlu0 %115, %v74
    %v117 = vpop.permute.xlu0 %116
    %120 = vset.pattern.permute.xlu0 0
    %121 = vperm.xlu0 %120, %v75
    %v122 = vpop.permute.xlu0 %121
    %125 = vset.pattern.permute.xlu0 0
    %126 = vperm.xlu0 %125, %v76
    %v127 = vpop.permute.xlu0 %126
    %130 = vset.pattern.permute.xlu0 0
    %131 = vperm.xlu0 %130, %v77
    %v132 = vpop.permute.xlu0 %131
    %135 = vset.pattern.permute.xlu0 0
    %136 = vperm.xlu0 %135, %v78
    %v137 = vpop.permute.xlu0 %136
    %140 = vset.pattern.permute.xlu0 0
    %141 = vperm.xlu0 %140, %v79
    %v142 = vpop.permute.xlu0 %141
    %145 = vset.pattern.permute.xlu0 0
    %146 = vperm.xlu0 %145, %v80
    %v147 = vpop.permute.xlu0 %146
    %150 = vset.pattern.permute.xlu0 0
    %151 = vperm.xlu0 %150, %v81
    %v152 = vpop.permute.xlu0 %151
    %155 = vset.pattern.permute.xlu0 0
    %156 = vperm.xlu0 %155, %v82
    %v157 = vpop.permute.xlu0 %156
    %160 = vset.pattern.permute.xlu0 0
    %161 = vperm.xlu0 %160, %v83
    %v162 = vpop.permute.xlu0 %161
    %vm164 = vcmask 261120
    %v166 = vsel %vm164, %v52, 0
    %v169 = vsel %vm164, %v53, 0
    %v172 = vsel %vm164, %v54, 0
    %v175 = vsel %vm164, %v55, 0
    %v178 = vsel %vm164, %v56, 0
    %v181 = vsel %vm164, %v57, 0
    %v184 = vsel %vm164, %v58, 0
    %v187 = vsel %vm164, %v59, 0
    %v190 = vsel %vm164, %v60, 0
    %v193 = vsel %vm164, %v61, 0
    %v196 = vsel %vm164, %v62, 0
    %v199 = vsel %vm164, %v63, 0
    %v202 = vsel %vm164, %v64, 0
    %v205 = vsel %vm164, %v65, 0
    %v208 = vsel %vm164, %v66, 0
    %v211 = vsel %vm164, %v67, 0
    %213 = vmatprep.subr.mxu0 0.0
    %214 = vmatpush1.msra.mxu0 %v41
    %215 = vmatprep.subr.mxu0 0.0
    %216 = vmatpush1.msra.mxu0 %v42
    %217 = vmatprep.subr.mxu0 0.0
    %218 = vmatpush1.msra.mxu0 %v43
    %219 = vmatprep.subr.mxu0 0.0
    %220 = vmatpush1.msra.mxu0 %v44
    %221 = vmatprep.subr.mxu0 0.0
    %222 = vmatpush1.msra.mxu0 0.0
    %223 = vmatprep.subr.mxu0 0.0
    %224 = vmatpush1.msra.mxu0 0.0
    %225 = vmatprep.subr.mxu0 0.0
    %226 = vmatpush1.msra.mxu0 0.0
    %227 = vmatprep.subr.mxu0 0.0
    %228 = vmatpush1.msra.mxu0 0.0
    %229 = vmatprep.subr.mxu0 0.0
    %230 = vmatpush1.msra.mxu0 0.0
    %231 = vmatprep.subr.mxu0 0.0
    %232 = vmatpush1.msra.mxu0 0.0
    %233 = vmatprep.subr.mxu0 0.0
    %234 = vmatpush1.msra.mxu0 0.0
    %235 = vmatprep.subr.mxu0 0.0
    %236 = vmatpush1.msra.mxu0 0.0
    %237 = vmatprep.subr.mxu0 0.0
    %238 = vmatpush1.msra.mxu0 0.0
    %239 = vmatprep.subr.mxu0 0.0
    %240 = vmatpush1.msra.mxu0 0.0
    %241 = vmatprep.subr.mxu0 0.0
    %242 = vmatpush1.msra.mxu0 0.0
    %243 = vmatprep.subr.mxu0 0.0
    %244 = vmatpush1.msra.mxu0 0.0
    %245 = vmatprep.subr.mxu0 0.0
    %246 = vmatpush1.msra.mxu0 0.0
    %247 = vmatprep.subr.mxu0 0.0
    %248 = vmatpush1.msra.mxu0 0.0
    %249 = vmatprep.subr.mxu0 0.0
    %250 = vmatpush1.msra.mxu0 0.0
    %251 = vmatprep.subr.mxu0 0.0
    %252 = vmatpush1.msra.mxu0 0.0
    %253 = vmatprep.subr.mxu0 0.0
    %254 = vmatpush1.msra.mxu0 0.0
    %255 = vmatprep.subr.mxu0 0.0
    %256 = vmatpush1.msra.mxu0 0.0
    %257 = vmatprep.subr.mxu0 0.0
    %258 = vmatpush1.msra.mxu0 0.0
    %259 = vmatprep.subr.mxu0 0.0
    %260 = vmatpush1.msra.mxu0 0.0
    %261 = vmatprep.subr.mxu0 0.0
    %262 = vmatpush1.msra.mxu0 0.0
    %263 = vmatprep.subr.mxu0 0.0
    %264 = vmatpush1.msra.mxu0 0.0
    %265 = vmatprep.subr.mxu0 0.0
    %266 = vmatpush1.msra.mxu0 0.0
    %267 = vmatprep.subr.mxu0 0.0
    %268 = vmatpush1.msra.mxu0 0.0
    %269 = vmatprep.subr.mxu0 0.0
    %270 = vmatpush1.msra.mxu0 0.0
    %271 = vmatprep.subr.mxu0 0.0
    %272 = vmatpush1.msra.mxu0 0.0
    %273 = vmatprep.subr.mxu0 0.0
    %274 = vmatpush1.msra.mxu0 0.0
    %275 = vmatprep.subr.mxu0 0.0
    %276 = vmatpush1.msra.mxu0 0.0
    %277 = vmatprep.mubr.f32.mxu0 0.0
    %278 = vmatmul.mubr.f32.gmra.mrb[0].mxu0 %v166
    %v279 = vpop.f32.mrb[0].mxu0
    %v280 = vadd.f32 %v87, %v279
    %v281 = vpop.f32.mrb[0].mxu0
    %282 = vmatprep.mubr.f32.mxu0 0.0
    %283 = vmatmul.mubr.f32.gmra.mrb[0].mxu0 %v169
    %v284 = vpop.f32.mrb[0].mxu0
    %v285 = vadd.f32 %v92, %v284
    %v286 = vpop.f32.mrb[0].mxu0
    %287 = vmatprep.mubr.f32.mxu0 0.0
    %288 = vmatmul.mubr.f32.gmra.mrb[0].mxu0 %v172
    %v289 = vpop.f32.mrb[0].mxu0
    %v290 = vadd.f32 %v97, %v289
    %v291 = vpop.f32.mrb[0].mxu0
    %292 = vmatprep.mubr.f32.mxu0 0.0
    %293 = vmatmul.mubr.f32.gmra.mrb[0].mxu0 %v175
    %v294 = vpop.f32.mrb[0].mxu0
    %v295 = vadd.f32 %v102, %v294
    %v296 = vpop.f32.mrb[0].mxu0
    %297 = vmatprep.mubr.f32.mxu0 0.0
    %298 = vmatmul.mubr.f32.gmra.mrb[0].mxu0 %v178
    %v299 = vpop.f32.mrb[0].mxu0
    %v300 = vadd.f32 %v107, %v299
    %v301 = vpop.f32.mrb[0].mxu0
    %302 = vmatprep.mubr.f32.mxu0 0.0
    %303 = vmatmul.mubr.f32.gmra.mrb[0].mxu0 %v181
    %v304 = vpop.f32.mrb[0].mxu0
    %v305 = vadd.f32 %v112, %v304
    %v306 = vpop.f32.mrb[0].mxu0
    %307 = vmatprep.mubr.f32.mxu0 0.0
    %308 = vmatmul.mubr.f32.gmra.mrb[0].mxu0 %v184
    %v309 = vpop.f32.mrb[0].mxu0
    %v310 = vadd.f32 %v117, %v309
    %v311 = vpop.f32.mrb[0].mxu0
    %312 = vmatprep.mubr.f32.mxu0 0.0
    %313 = vmatmul.mubr.f32.gmra.mrb[0].mxu0 %v187
    %v314 = vpop.f32.mrb[0].mxu0
    %v315 = vadd.f32 %v122, %v314
    %v316 = vpop.f32.mrb[0].mxu0
    %317 = vmatprep.mubr.f32.mxu0 0.0
    %318 = vmatmul.mubr.f32.gmra.mrb[0].mxu0 %v190
    %v319 = vpop.f32.mrb[0].mxu0
    %v320 = vadd.f32 %v127, %v319
    %v321 = vpop.f32.mrb[0].mxu0
    %322 = vmatprep.mubr.f32.mxu0 0.0
    %323 = vmatmul.mubr.f32.gmra.mrb[0].mxu0 %v193
    %v324 = vpop.f32.mrb[0].mxu0
    %v325 = vadd.f32 %v132, %v324
    %v326 = vpop.f32.mrb[0].mxu0
    %327 = vmatprep.mubr.f32.mxu0 0.0
    %328 = vmatmul.mubr.f32.gmra.mrb[0].mxu0 %v196
    %v329 = vpop.f32.mrb[0].mxu0
    %v330 = vadd.f32 %v137, %v329
    %v331 = vpop.f32.mrb[0].mxu0
    %332 = vmatprep.mubr.f32.mxu0 0.0
    %333 = vmatmul.mubr.f32.gmra.mrb[0].mxu0 %v199
    %v334 = vpop.f32.mrb[0].mxu0
    %v335 = vadd.f32 %v142, %v334
    %v336 = vpop.f32.mrb[0].mxu0
    %337 = vmatprep.mubr.f32.mxu0 0.0
    %338 = vmatmul.mubr.f32.gmra.mrb[0].mxu0 %v202
    %v339 = vpop.f32.mrb[0].mxu0
    %v340 = vadd.f32 %v147, %v339
    %v341 = vpop.f32.mrb[0].mxu0
    %342 = vmatprep.mubr.f32.mxu0 0.0
    %343 = vmatmul.mubr.f32.gmra.mrb[0].mxu0 %v205
    %v344 = vpop.f32.mrb[0].mxu0
    %v345 = vadd.f32 %v152, %v344
    %v346 = vpop.f32.mrb[0].mxu0
    %347 = vmatprep.mubr.f32.mxu0 0.0
    %348 = vmatmul.mubr.f32.gmra.mrb[0].mxu0 %v208
    %v349 = vpop.f32.mrb[0].mxu0
    %v350 = vadd.f32 %v157, %v349
    %v351 = vpop.f32.mrb[0].mxu0
    %352 = vmatprep.mubr.f32.mxu0 0.0
    %353 = vmatmul.mubr.f32.gmra.mrb[0].mxu0 %v211
    %v354 = vpop.f32.mrb[0].mxu0
    %v355 = vadd.f32 %v162, %v354
    %v356 = vpop.f32.mrb[0].mxu0
    %357 = vdwg.mxu0
    %v358 = vmax.f32 %v280, 0.0
    %v359 = vmax.f32 %v285, 0.0
    %v360 = vmax.f32 %v290, 0.0
    %v361 = vmax.f32 %v295, 0.0
    %v362 = vmax.f32 %v300, 0.0
    %v363 = vmax.f32 %v305, 0.0
    %v364 = vmax.f32 %v310, 0.0
    %v365 = vmax.f32 %v315, 0.0
    %v366 = vmax.f32 %v320, 0.0
    %v367 = vmax.f32 %v325, 0.0
    %v368 = vmax.f32 %v330, 0.0
    %v369 = vmax.f32 %v335, 0.0
    %v370 = vmax.f32 %v340, 0.0
    %v371 = vmax.f32 %v345, 0.0
    %v372 = vmax.f32 %v350, 0.0
    %v373 = vmax.f32 %v355, 0.0
    %v374 = vld [vmem:[%s5] sm:$0xff]
    %v375 = vld [vmem:[%s5 + $0x8] sm:$0xff]
    %v376 = vld [vmem:[%s5 + $0x10] sm:$0xff]
    %v377 = vld [vmem:[%s5 + $0x18] sm:$0xff]
    %v378 = vld [vmem:[%s6] sm:$0xff]
    %v379 = vld [vmem:[%s6 + $0x8] sm:$0xff]
    %v380 = vld [vmem:[%s6 + $0x10] sm:$0xff]
    %v381 = vld [vmem:[%s6 + $0x18] sm:$0xff]
    %383 = vset.pattern.permute.xlu0 0
    %384 = vperm.xlu0 %383, %v378
    %v385 = vpop.permute.xlu0 %384
    %388 = vset.pattern.permute.xlu0 0
    %389 = vperm.xlu0 %388, %v379
    %v390 = vpop.permute.xlu0 %389
    %393 = vset.pattern.permute.xlu0 0
    %394 = vperm.xlu0 %393, %v380
    %v395 = vpop.permute.xlu0 %394
    %398 = vset.pattern.permute.xlu0 0
    %399 = vperm.xlu0 %398, %v381
    %v400 = vpop.permute.xlu0 %399
    %vm402 = vcmask 523264
    %v404 = vsel %vm402, %v374, 0
    %v407 = vsel %vm402, %v375, 0
    %v410 = vsel %vm402, %v376, 0
    %v413 = vsel %vm402, %v377, 0
    %415 = vmatprep.subr.mxu0 0.0
    %416 = vmatpush1.msra.mxu0 %v358
    %417 = vmatprep.subr.mxu0 0.0
    %418 = vmatpush1.msra.mxu0 %v359
    %419 = vmatprep.subr.mxu0 0.0
    %420 = vmatpush1.msra.mxu0 %v360
    %421 = vmatprep.subr.mxu0 0.0
    %422 = vmatpush1.msra.mxu0 %v361
    %423 = vmatprep.subr.mxu0 0.0
    %424 = vmatpush1.msra.mxu0 %v362
    %425 = vmatprep.subr.mxu0 0.0
    %426 = vmatpush1.msra.mxu0 %v363
    %427 = vmatprep.subr.mxu0 0.0
    %428 = vmatpush1.msra.mxu0 %v364
    %429 = vmatprep.subr.mxu0 0.0
    %430 = vmatpush1.msra.mxu0 %v365
    %431 = vmatprep.subr.mxu0 0.0
    %432 = vmatpush1.msra.mxu0 0.0
    %433 = vmatprep.subr.mxu0 0.0
    %434 = vmatpush1.msra.mxu0 0.0
    %435 = vmatprep.subr.mxu0 0.0
    %436 = vmatpush1.msra.mxu0 0.0
    %437 = vmatprep.subr.mxu0 0.0
    %438 = vmatpush1.msra.mxu0 0.0
    %439 = vmatprep.subr.mxu0 0.0
    %440 = vmatpush1.msra.mxu0 0.0
    %441 = vmatprep.subr.mxu0 0.0
    %442 = vmatpush1.msra.mxu0 0.0
    %443 = vmatprep.subr.mxu0 0.0
    %444 = vmatpush1.msra.mxu0 0.0
    %445 = vmatprep.subr.mxu0 0.0
    %446 = vmatpush1.msra.mxu0 0.0
    %447 = vmatprep.subr.mxu0 0.0
    %448 = vmatpush1.msra.mxu0 0.0
    %449 = vmatprep.subr.mxu0 0.0
    %450 = vmatpush1.msra.mxu0 0.0
    %451 = vmatprep.subr.mxu0 0.0
    %452 = vmatpush1.msra.mxu0 0.0
    %453 = vmatprep.subr.mxu0 0.0
    %454 = vmatpush1.msra.mxu0 0.0
    %455 = vmatprep.subr.mxu0 0.0
    %456 = vmatpush1.msra.mxu0 0.0
    %457 = vmatprep.subr.mxu0 0.0
    %458 = vmatpush1.msra.mxu0 0.0
    %459 = vmatprep.subr.mxu0 0.0
    %460 = vmatpush1.msra.mxu0 0.0
    %461 = vmatprep.subr.mxu0 0.0
    %462 = vmatpush1.msra.mxu0 0.0
    %463 = vmatprep.subr.mxu0 0.0
    %464 = vmatpush1.msra.mxu0 0.0
    %465 = vmatprep.subr.mxu0 0.0
    %466 = vmatpush1.msra.mxu0 0.0
    %467 = vmatprep.subr.mxu0 0.0
    %468 = vmatpush1.msra.mxu0 0.0
    %469 = vmatprep.subr.mxu0 0.0
    %470 = vmatpush1.msra.mxu0 0.0
    %471 = vmatprep.subr.mxu0 0.0
    %472 = vmatpush1.msra.mxu0 0.0
    %473 = vmatprep.subr.mxu0 0.0
    %474 = vmatpush1.msra.mxu0 0.0
    %475 = vmatprep.subr.mxu0 0.0
    %476 = vmatpush1.msra.mxu0 0.0
    %477 = vmatprep.subr.mxu0 0.0
    %478 = vmatpush1.msra.mxu0 0.0
    %479 = vmatprep.mubr.f32.mxu0 0.0
    %480 = vmatmul.mubr.f32.gmra.mrb[0].mxu0 %v404
    %v481 = vpop.f32.mrb[0].mxu0
    %v482 = vadd.f32 %v385, %v481
    %v483 = vpop.f32.mrb[0].mxu0
    %484 = vmatprep.mubr.f32.mxu0 0.0
    %485 = vmatmul.mubr.f32.gmra.mrb[0].mxu0 %v407
    %v486 = vpop.f32.mrb[0].mxu0
    %v487 = vadd.f32 %v390, %v486
    %v488 = vpop.f32.mrb[0].mxu0
    %489 = vmatprep.mubr.f32.mxu0 0.0
    %490 = vmatmul.mubr.f32.gmra.mrb[0].mxu0 %v410
    %v491 = vpop.f32.mrb[0].mxu0
    %v492 = vadd.f32 %v395, %v491
    %v493 = vpop.f32.mrb[0].mxu0
    %494 = vmatprep.mubr.f32.mxu0 0.0
    %495 = vmatmul.mubr.f32.gmra.mrb[0].mxu0 %v413
    %v496 = vpop.f32.mrb[0].mxu0
    %v497 = vadd.f32 %v400, %v496
    %v498 = vpop.f32.mrb[0].mxu0
    %499 = vdwg.mxu0
    %v500 = vld [vmem:[%s7] sm:$0x1]
    %v501 = vld [vmem:[#allocation2] sm:$0x1]
    %503 = vset.pattern.permute.xlu0 0
    %504 = vperm.xlu0 %503, %v501
    %v505 = vpop.permute.xlu0 %504
    %v507 = vlaneseq
    %v508 = vshrl.u32 %v507, 7
    %v509 = vsub.s32 0, %v508
    %v510 = vrot.slane %v505, %v509
    %v512 = vsel %vm402, %v500, 0
    %514 = vmatprep.subr.mxu0 0.0
    %515 = vmatpush1.msra.mxu0 %v366
    %516 = vmatprep.subr.mxu0 0.0
    %517 = vmatpush1.msra.mxu0 %v367
    %518 = vmatprep.subr.mxu0 0.0
    %519 = vmatpush1.msra.mxu0 %v368
    %520 = vmatprep.subr.mxu0 0.0
    %521 = vmatpush1.msra.mxu0 %v369
    %522 = vmatprep.subr.mxu0 0.0
    %523 = vmatpush1.msra.mxu0 %v370
    %524 = vmatprep.subr.mxu0 0.0
    %525 = vmatpush1.msra.mxu0 %v371
    %526 = vmatprep.subr.mxu0 0.0
    %527 = vmatpush1.msra.mxu0 %v372
    %528 = vmatprep.subr.mxu0 0.0
    %529 = vmatpush1.msra.mxu0 %v373
    %530 = vmatprep.subr.mxu0 0.0
    %531 = vmatpush1.msra.mxu0 0.0
    %532 = vmatprep.subr.mxu0 0.0
    %533 = vmatpush1.msra.mxu0 0.0
    %534 = vmatprep.subr.mxu0 0.0
    %535 = vmatpush1.msra.mxu0 0.0
    %536 = vmatprep.subr.mxu0 0.0
    %537 = vmatpush1.msra.mxu0 0.0
    %538 = vmatprep.subr.mxu0 0.0
    %539 = vmatpush1.msra.mxu0 0.0
    %540 = vmatprep.subr.mxu0 0.0
    %541 = vmatpush1.msra.mxu0 0.0
    %542 = vmatprep.subr.mxu0 0.0
    %543 = vmatpush1.msra.mxu0 0.0
    %544 = vmatprep.subr.mxu0 0.0
    %545 = vmatpush1.msra.mxu0 0.0
    %546 = vmatprep.subr.mxu0 0.0
    %547 = vmatpush1.msra.mxu0 0.0
    %548 = vmatprep.subr.mxu0 0.0
    %549 = vmatpush1.msra.mxu0 0.0
    %550 = vmatprep.subr.mxu0 0.0
    %551 = vmatpush1.msra.mxu0 0.0
    %552 = vmatprep.subr.mxu0 0.0
    %553 = vmatpush1.msra.mxu0 0.0
    %554 = vmatprep.subr.mxu0 0.0
    %555 = vmatpush1.msra.mxu0 0.0
    %556 = vmatprep.subr.mxu0 0.0
    %557 = vmatpush1.msra.mxu0 0.0
    %558 = vmatprep.subr.mxu0 0.0
    %559 = vmatpush1.msra.mxu0 0.0
    %560 = vmatprep.subr.mxu0 0.0
    %561 = vmatpush1.msra.mxu0 0.0
    %562 = vmatprep.subr.mxu0 0.0
    %563 = vmatpush1.msra.mxu0 0.0
    %564 = vmatprep.subr.mxu0 0.0
    %565 = vmatpush1.msra.mxu0 0.0
    %566 = vmatprep.subr.mxu0 0.0
    %567 = vmatpush1.msra.mxu0 0.0
    %568 = vmatprep.subr.mxu0 0.0
    %569 = vmatpush1.msra.mxu0 0.0
    %570 = vmatprep.subr.mxu0 0.0
    %571 = vmatpush1.msra.mxu0 0.0
    %572 = vmatprep.subr.mxu0 0.0
    %573 = vmatpush1.msra.mxu0 0.0
    %574 = vmatprep.subr.mxu0 0.0
    %575 = vmatpush1.msra.mxu0 0.0
    %576 = vmatprep.subr.mxu0 0.0
    %577 = vmatpush1.msra.mxu0 0.0
    %578 = vmatprep.mubr.f32.mxu0 0.0
    %579 = vmatmul.mubr.f32.gmra.mrb[0].mxu0 %v512
    %v580 = vpop.f32.mrb[0].mxu0
    %v581 = vadd.f32 %v510, %v580
    %v582 = vpop.f32.mrb[0].mxu0
    %583 = vdwg.mxu0
    %v584 = vlaneseq
    %v585 = vshrl.u32 %v584, 7
    %v586 = vsub.s32 0, %v585
    %v587 = vrot.slane %v45, %v586
    %v588 = vmul.f32 %v587, %v46
    %v589 = vmul.f32 %v587, %v47
    %v590 = vlaneseq
    %v591 = vshrl.u32 %v590, 7
    %v592 = vsub.s32 1, %v591
    %v593 = vrot.slane %v45, %v592
    %v594 = vmul.f32 %v593, %v48
    %v595 = vmul.f32 %v593, %v49
    %v596 = vadd.f32 %v588, %v594
    %v597 = vadd.f32 %v589, %v595
    %v598 = vlaneseq
    %v599 = vshrl.u32 %v598, 7
    %v600 = vsub.s32 2, %v599
    %v601 = vrot.slane %v45, %v600
    %v602 = vmul.f32 %v601, %v50
    %v603 = vmul.f32 %v601, %v51
    %v604 = vadd.f32 %v596, %v602
    %v605 = vadd.f32 %v597, %v603
    %v606 = vld [vmem:[%s9] sm:$0xff]
    %v607 = vld [vmem:[%s9 + $0x8] sm:$0xff]
    %v608 = vld [vmem:[%s9 + $0x10] sm:$0xff]
    %v609 = vld [vmem:[%s9 + $0x18] sm:$0xff]
    %vm610 = vcmask 130048
    %v612 = vsel %vm610, %v606, 0
    %v615 = vsel %vm610, %v607, 0
    %v618 = vsel %vm610, %v608, 0
    %v621 = vsel %vm610, %v609, 0
    %623 = vmatprep.subr.mxu0 0.0
    %624 = vmatpush1.msra.mxu0 %v604
    %625 = vmatprep.subr.mxu0 0.0
    %626 = vmatpush1.msra.mxu0 %v605
    %627 = vmatprep.subr.mxu0 0.0
    %628 = vmatpush1.msra.mxu0 0.0
    %629 = vmatprep.subr.mxu0 0.0
    %630 = vmatpush1.msra.mxu0 0.0
    %631 = vmatprep.subr.mxu0 0.0
    %632 = vmatpush1.msra.mxu0 0.0
    %633 = vmatprep.subr.mxu0 0.0
    %634 = vmatpush1.msra.mxu0 0.0
    %635 = vmatprep.subr.mxu0 0.0
    %636 = vmatpush1.msra.mxu0 0.0
    %637 = vmatprep.subr.mxu0 0.0
    %638 = vmatpush1.msra.mxu0 0.0
    %639 = vmatprep.subr.mxu0 0.0
    %640 = vmatpush1.msra.mxu0 0.0
    %641 = vmatprep.subr.mxu0 0.0
    %642 = vmatpush1.msra.mxu0 0.0
    %643 = vmatprep.subr.mxu0 0.0
    %644 = vmatpush1.msra.mxu0 0.0
    %645 = vmatprep.subr.mxu0 0.0
    %646 = vmatpush1.msra.mxu0 0.0
    %647 = vmatprep.subr.mxu0 0.0
    %648 = vmatpush1.msra.mxu0 0.0
    %649 = vmatprep.subr.mxu0 0.0
    %650 = vmatpush1.msra.mxu0 0.0
    %651 = vmatprep.subr.mxu0 0.0
    %652 = vmatpush1.msra.mxu0 0.0
    %653 = vmatprep.subr.mxu0 0.0
    %654 = vmatpush1.msra.mxu0 0.0
    %655 = vmatprep.subr.mxu0 0.0
    %656 = vmatpush1.msra.mxu0 0.0
    %657 = vmatprep.subr.mxu0 0.0
    %658 = vmatpush1.msra.mxu0 0.0
    %659 = vmatprep.subr.mxu0 0.0
    %660 = vmatpush1.msra.mxu0 0.0
    %661 = vmatprep.subr.mxu0 0.0
    %662 = vmatpush1.msra.mxu0 0.0
    %663 = vmatprep.subr.mxu0 0.0
    %664 = vmatpush1.msra.mxu0 0.0
    %665 = vmatprep.subr.mxu0 0.0
    %666 = vmatpush1.msra.mxu0 0.0
    %667 = vmatprep.subr.mxu0 0.0
    %668 = vmatpush1.msra.mxu0 0.0
    %669 = vmatprep.subr.mxu0 0.0
    %670 = vmatpush1.msra.mxu0 0.0
    %671 = vmatprep.subr.mxu0 0.0
    %672 = vmatpush1.msra.mxu0 0.0
    %673 = vmatprep.subr.mxu0 0.0
    %674 = vmatpush1.msra.mxu0 0.0
    %675 = vmatprep.subr.mxu0 0.0
    %676 = vmatpush1.msra.mxu0 0.0
    %677 = vmatprep.subr.mxu0 0.0
    %678 = vmatpush1.msra.mxu0 0.0
    %679 = vmatprep.subr.mxu0 0.0
    %680 = vmatpush1.msra.mxu0 0.0
    %681 = vmatprep.subr.mxu0 0.0
    %682 = vmatpush1.msra.mxu0 0.0
    %683 = vmatprep.subr.mxu0 0.0
    %684 = vmatpush1.msra.mxu0 0.0
    %685 = vmatprep.subr.mxu0 0.0
    %686 = vmatpush1.msra.mxu0 0.0
    %687 = vmatprep.mubr.f32.mxu0 0.0
    %688 = vmatmul.mubr.f32.gmra.mrb[0].mxu0 %v612
    %v689 = vpop.f32.mrb[0].mxu0
    %v690 = vadd.f32 0.0, %v689
    %v691 = vpop.f32.mrb[0].mxu0
    %692 = vmatprep.mubr.f32.mxu0 0.0
    %693 = vmatmul.mubr.f32.gmra.mrb[0].mxu0 %v615
    %v694 = vpop.f32.mrb[0].mxu0
    %v695 = vadd.f32 0.0, %v694
    %v696 = vpop.f32.mrb[0].mxu0
    %697 = vmatprep.mubr.f32.mxu0 0.0
    %698 = vmatmul.mubr.f32.gmra.mrb[0].mxu0 %v618
    %v699 = vpop.f32.mrb[0].mxu0
    %v700 = vadd.f32 0.0, %v699
    %v701 = vpop.f32.mrb[0].mxu0
    %702 = vmatprep.mubr.f32.mxu0 0.0
    %703 = vmatmul.mubr.f32.gmra.mrb[0].mxu0 %v621
    %v704 = vpop.f32.mrb[0].mxu0
    %v705 = vadd.f32 0.0, %v704
    %v706 = vpop.f32.mrb[0].mxu0
    %707 = vdwg.mxu0
    %v708 = vmul.f32 %v482, %v690
    %v709 = vmul.f32 %v487, %v695
    %v710 = vmul.f32 %v492, %v700
    %v711 = vmul.f32 %v497, %v705
    %v712 = vadd.f32 %v708, %v709
    %v713 = vadd.f32 %v712, %v710
    %v714 = vadd.f32 %v713, %v711
    %v715 = vrot.slane %v714, 4
    %v716 = vadd.f32 %v714, %v715
    %v717 = vrot.slane %v716, 2
    %v718 = vadd.f32 %v716, %v717
    %v719 = vrot.slane %v718, 1
    %v720 = vadd.f32 %v718, %v719
    %v721 = vld [vmem:[%s10] sm:$0x1]
    %v723 = vsel %vm164, %v721, 0
    %725 = vmatprep.subr.mxu0 0.0
    %726 = vmatpush1.msra.mxu0 %v482
    %727 = vmatprep.subr.mxu0 0.0
    %728 = vmatpush1.msra.mxu0 %v487
    %729 = vmatprep.subr.mxu0 0.0
    %730 = vmatpush1.msra.mxu0 %v492
    %731 = vmatprep.subr.mxu0 0.0
    %732 = vmatpush1.msra.mxu0 %v497
    %733 = vmatprep.subr.mxu0 0.0
    %734 = vmatpush1.msra.mxu0 0.0
    %735 = vmatprep.subr.mxu0 0.0
    %736 = vmatpush1.msra.mxu0 0.0
    %737 = vmatprep.subr.mxu0 0.0
    %738 = vmatpush1.msra.mxu0 0.0
    %739 = vmatprep.subr.mxu0 0.0
    %740 = vmatpush1.msra.mxu0 0.0
    %741 = vmatprep.subr.mxu0 0.0
    %742 = vmatpush1.msra.mxu0 0.0
    %743 = vmatprep.subr.mxu0 0.0
    %744 = vmatpush1.msra.mxu0 0.0
    %745 = vmatprep.subr.mxu0 0.0
    %746 = vmatpush1.msra.mxu0 0.0
    %747 = vmatprep.subr.mxu0 0.0
    %748 = vmatpush1.msra.mxu0 0.0
    %749 = vmatprep.subr.mxu0 0.0
    %750 = vmatpush1.msra.mxu0 0.0
    %751 = vmatprep.subr.mxu0 0.0
    %752 = vmatpush1.msra.mxu0 0.0
    %753 = vmatprep.subr.mxu0 0.0
    %754 = vmatpush1.msra.mxu0 0.0
    %755 = vmatprep.subr.mxu0 0.0
    %756 = vmatpush1.msra.mxu0 0.0
    %757 = vmatprep.subr.mxu0 0.0
    %758 = vmatpush1.msra.mxu0 0.0
    %759 = vmatprep.subr.mxu0 0.0
    %760 = vmatpush1.msra.mxu0 0.0
    %761 = vmatprep.subr.mxu0 0.0
    %762 = vmatpush1.msra.mxu0 0.0
    %763 = vmatprep.subr.mxu0 0.0
    %764 = vmatpush1.msra.mxu0 0.0
    %765 = vmatprep.subr.mxu0 0.0
    %766 = vmatpush1.msra.mxu0 0.0
    %767 = vmatprep.subr.mxu0 0.0
    %768 = vmatpush1.msra.mxu0 0.0
    %769 = vmatprep.subr.mxu0 0.0
    %770 = vmatpush1.msra.mxu0 0.0
    %771 = vmatprep.subr.mxu0 0.0
    %772 = vmatpush1.msra.mxu0 0.0
    %773 = vmatprep.subr.mxu0 0.0
    %774 = vmatpush1.msra.mxu0 0.0
    %775 = vmatprep.subr.mxu0 0.0
    %776 = vmatpush1.msra.mxu0 0.0
    %777 = vmatprep.subr.mxu0 0.0
    %778 = vmatpush1.msra.mxu0 0.0
    %779 = vmatprep.subr.mxu0 0.0
    %780 = vmatpush1.msra.mxu0 0.0
    %781 = vmatprep.subr.mxu0 0.0
    %782 = vmatpush1.msra.mxu0 0.0
    %783 = vmatprep.subr.mxu0 0.0
    %784 = vmatpush1.msra.mxu0 0.0
    %785 = vmatprep.subr.mxu0 0.0
    %786 = vmatpush1.msra.mxu0 0.0
    %787 = vmatprep.subr.mxu0 0.0
    %788 = vmatpush1.msra.mxu0 0.0
    %789 = vmatprep.mubr.f32.mxu0 0.0
    %790 = vmatmul.mubr.f32.gmra.mrb[0].mxu0 %v723
    %v791 = vpop.f32.mrb[0].mxu0
    %v792 = vadd.f32 0.0, %v791
    %v793 = vpop.f32.mrb[0].mxu0
    %794 = vdwg.mxu0
    %vm795 = vcmask 1042432
    %v796 = vsel %vm795, %v45, 0.0
    %v797 = vrot.slane %v796, 4
    %v798 = vadd.f32 %v796, %v797
    %v799 = vrot.slane %v798, 2
    %v800 = vadd.f32 %v798, %v799
    %v801 = vrot.slane %v800, 1
    %v802 = vadd.f32 %v800, %v801
    %v803 = vmul.f32 %v802, %v792
    %v804 = vadd.f32 %v720, %v803
    %v805 = vadd.f32 %v804, %v581
    %806 = vst [vmem:[#allocation3] sm:$0x1] %v805
    // Predicated region
    $region46: #{tpu_custom_call.1} parent=1 // pred_check
      _
    $region47: #{tpu_custom_call.1} parent=1 // pred_check_branch
      %808 = sbr.rel (0) target = $region49
    $region48: #{tpu_custom_call.1} parent=1 // pred_region
      %s810 = ssub.s32 16, 16
      %811 = vsyncadd [#allocation4], %s810
      %s813 = sshll.u32 [#allocation3], 4
      %s814 = int_to_ptr.vmem [resolvable:$true] %s813
      %816 = dma.vmem_to_hbm [thread:$0]  %s814, 16, %s11, [#allocation4]
    $region49: #{tpu_custom_call.1} parent=1 // pred_fallthru
      _
    // Predicated region
    $region50: #{tpu_custom_call.1} parent=1 // pred_check
      _
    $region51: #{tpu_custom_call.1} parent=1 // pred_check_branch
      %818 = sbr.rel (0) target = $region53
    $region52: #{tpu_custom_call.1} parent=1 // pred_region
      %819 = dma.done [#allocation4], 16
    $region53: #{tpu_custom_call.1} parent=1 // pred_fallthru
      _
    %820 = vsyncpa [#allocation4], 1

</llo_original>
